<compile_context>
chip_gen: v7x
topology: tpu7x:2x2x1
jax: 0.10.0
libtpu: 0.0.40
codegen_flags: <defaults>
</compile_context>

<pallas_src>
import jax
import jax.numpy as jnp
from jax import lax
from jax.experimental import pallas as pl
from jax.experimental.pallas import tpu as pltpu

EMB_DIM = 2
CTX_LEN = 3
HIDDEN_DIM = 200
NUM_CLASSES = 27
IN_DIM = EMB_DIM * CTX_LEN          # 6

OH_PAD = 128                        # one-hot lanes per position: 27 -> one full vreg width
HIDDEN_PAD = 256                    # hidden 200 -> 256 lanes
CLASS_PAD = 128                     # classes 27 -> 128 lanes


def _round_up(x, m):
    return (x + m - 1) // m * m


def mlp_lm_kernel(ids_ref, t_ref, b1_ref, w2_ref, b2_ref, out_ref):
    """One batch tile.

    ids_ref: (tb, CTX_LEN)                 int32  token ids (only streamed input)
    t_ref  : (CTX_LEN, OH_PAD, HIDDEN_PAD) bf16   folded C@W1 tables (VMEM-resident)
    b1_ref : (1, HIDDEN_PAD)               f32    zero-padded b1
    w2_ref : (HIDDEN_PAD, CLASS_PAD)       bf16   zero-padded W2 (VMEM-resident)
    b2_ref : (1, CLASS_PAD)                f32    zero-padded b2
    out_ref: (tb, CLASS_PAD)               bf16   padded logits (lane-dense store)
    """
    tb = out_ref.shape[0]
    lane = lax.broadcasted_iota(jnp.int32, (tb, OH_PAD), 1)       # hoisted, reused 3x
    pre = jnp.zeros((tb, HIDDEN_PAD), jnp.float32)
    for t in range(CTX_LEN):
        # Decode ids -> exact 0/1 one-hot (bf16) and hit the MXU against T[t].
        oh = (lane == ids_ref[:, t:t + 1]).astype(jnp.bfloat16)   # (tb, 128)
        pre = pre + jnp.dot(oh, t_ref[t], preferred_element_type=jnp.float32)
    h = jnp.tanh(pre + b1_ref[...])                               # f32 tanh on the EUP
    logits = (
        jnp.dot(h.astype(jnp.bfloat16), w2_ref[...],              # bf16 MXU, f32 accum
                preferred_element_type=jnp.float32)
        + b2_ref[...]
    )
    out_ref[...] = logits.astype(out_ref.dtype)                   # bf16 lane-dense store


def prepare_params(C, W1, b1, W2, b2):
    """Fold C into W1 and pad weights once (hoisted out of the per-call path)."""
    W1r = W1.astype(jnp.float32).reshape(CTX_LEN, EMB_DIM, HIDDEN_DIM)
    # T[t, v, :] = C[v] @ W1[t*EMB_DIM:(t+1)*EMB_DIM]   -> (3, 27, 200)
    T = jnp.einsum("ve,teh->tvh", C.astype(jnp.float32), W1r)
    T_p = jnp.pad(T, ((0, 0),
                      (0, OH_PAD - NUM_CLASSES),
                      (0, HIDDEN_PAD - HIDDEN_DIM))).astype(jnp.bfloat16)
    b1_p = jnp.pad(b1.astype(jnp.float32),
                   (0, HIDDEN_PAD - HIDDEN_DIM)).reshape(1, HIDDEN_PAD)
    W2_p = jnp.pad(W2.astype(jnp.float32),
                   ((0, HIDDEN_PAD - HIDDEN_DIM),
                    (0, CLASS_PAD - NUM_CLASSES))).astype(jnp.bfloat16)
    b2_p = jnp.pad(b2.astype(jnp.float32),
                   (0, CLASS_PAD - NUM_CLASSES)).reshape(1, CLASS_PAD)
    return T_p, b1_p, W2_p, b2_p


def mlp_lm_forward(x, prepared, *, tb_max=2048):
    """x: int (B, CTX_LEN) token indices. Returns logits (B, NUM_CLASSES) bf16."""
    T_p, b1_p, W2_p, b2_p = prepared
    B = x.shape[0]

    # Tile: multiple of 16 rows (bf16 sublane packing); aim for >=2 grid steps so the
    # "parallel" batch axis uses both TensorCores on v7x (harmless no-op on v5e/v6e).
    tb = max(16, min(tb_max, _round_up(pl.cdiv(B, 2), 16)))
    B_pad = _round_up(B, tb)
    grid = (B_pad // tb,)

    # Only per-call pad: tiny int32 ids slab, via fused jnp.pad (pad rows use token 0).
    ids = jnp.pad(x.astype(jnp.int32), ((0, B_pad - B), (0, 0)))

    cost = pl.CostEstimate(
        flops=B_pad * (2 * CTX_LEN * OH_PAD * HIDDEN_PAD + 2 * HIDDEN_PAD * CLASS_PAD),
        transcendentals=B_pad * HIDDEN_PAD,
        bytes_accessed=(B_pad * CTX_LEN * 4                     # ids in (int32)
                        + CTX_LEN * OH_PAD * HIDDEN_PAD * 2     # folded T (bf16)
                        + HIDDEN_PAD * 4                        # b1 (f32)
                        + HIDDEN_PAD * CLASS_PAD * 2            # W2 (bf16)
                        + CLASS_PAD * 4                         # b2 (f32)
                        + B_pad * CLASS_PAD * 2),               # logits out (bf16)
    )

    out_p = pl.pallas_call(
        mlp_lm_kernel,
        out_shape=jax.ShapeDtypeStruct((B_pad, CLASS_PAD), jnp.bfloat16),
        grid=grid,
        in_specs=[
            pl.BlockSpec((tb, CTX_LEN), lambda i: (i, 0)),
            pl.BlockSpec((CTX_LEN, OH_PAD, HIDDEN_PAD), lambda i: (0, 0, 0)),
            pl.BlockSpec((1, HIDDEN_PAD), lambda i: (0, 0)),
            pl.BlockSpec((HIDDEN_PAD, CLASS_PAD), lambda i: (0, 0)),
            pl.BlockSpec((1, CLASS_PAD), lambda i: (0, 0)),
        ],
        out_specs=pl.BlockSpec((tb, CLASS_PAD), lambda i: (i, 0)),
        compiler_params=pltpu.CompilerParams(
            dimension_semantics=("parallel",),   # batch-parallel (megacore on v7x)
        ),
        cost_estimate=cost,
    )(ids, T_p, b1_p, W2_p, b2_p)

    # NOTE: padded rows (B..B_pad) and lanes (27..128) are junk; consumers that can
    # accept the padded (B_pad, 128) slab should skip this slice entirely.
    return out_p[:B, :NUM_CLASSES]


if __name__ == "__main__":
    key = jax.random.PRNGKey(0)
    k_c, k_w1, k_b1, k_w2, k_b2, k_x = jax.random.split(key, 6)

    # scale_params=False -> scalar = 1.0 ; direct_connections=False
    scalar = 1.0
    C = scalar * jax.random.normal(k_c, (NUM_CLASSES, EMB_DIM), dtype=jnp.float32)
    W1 = scalar * jax.random.normal(k_w1, (IN_DIM, HIDDEN_DIM), dtype=jnp.float32)
    b1 = scalar * jax.random.normal(k_b1, (HIDDEN_DIM,), dtype=jnp.float32)
    W2 = scalar * jax.random.normal(k_w2, (HIDDEN_DIM, NUM_CLASSES), dtype=jnp.float32)
    b2 = scalar * jax.random.normal(k_b2, (NUM_CLASSES,), dtype=jnp.float32)

    B = 8  # small batch of contexts for the demo
    x = jax.random.randint(k_x, (B, CTX_LEN), 0, NUM_CLASSES, dtype=jnp.int32)

    prepared = prepare_params(C, W1, b1, W2, b2)      # hoisted: fold/pad weights once
    fwd = jax.jit(mlp_lm_forward)
    logits = jax.block_until_ready(fwd(x, prepared))
    assert logits.shape == (B, NUM_CLASSES)
    logits_f32 = logits.astype(jnp.float32)

    # Precision-matched reference (same bf16 folded table / bf16 MXU operands,
    # f32 accumulate, f32 tanh & bias, bf16 output).
    T = jnp.einsum("ve,teh->tvh", C, W1.reshape(CTX_LEN, EMB_DIM, HIDDEN_DIM))
    T_bf = T.astype(jnp.bfloat16).astype(jnp.float32)
    pre_ref = b1 + sum(T_bf[t][x[:, t]] for t in range(CTX_LEN))
    h_bf = jnp.tanh(pre_ref).astype(jnp.bfloat16).astype(jnp.float32)
    W2_bf = W2.astype(jnp.bfloat16).astype(jnp.float32)
    ref_matched = (h_bf @ W2_bf + b2).astype(jnp.bfloat16).astype(jnp.float32)
    assert jnp.allclose(logits_f32, ref_matched, atol=0.3, rtol=1e-2), \
        "mismatch (matched-precision ref)"

    # Loose full-f32 semantic check against the PyTorch-equivalent forward.
    emb = C[x].reshape(B, IN_DIM)
    ref_f32 = jnp.tanh(emb @ W1 + b1) @ W2 + b2
    assert jnp.allclose(logits_f32, ref_f32, atol=1.0, rtol=5e-2), \
        "mismatch (f32 semantic ref)"

    print("KERNEL_OK")
</pallas_src>

<mosaic_0001>
module attributes {stable_mosaic.version = 11 : i64} {
  func.func @mlp_lm_kernel(%arg0: i32, %arg1: memref<16x3xi32, #tpu.memory_space<vmem>>, %arg2: memref<3x128x256xbf16, #tpu.memory_space<vmem>>, %arg3: memref<1x256xf32, #tpu.memory_space<vmem>>, %arg4: memref<256x128xbf16, #tpu.memory_space<vmem>>, %arg5: memref<1x128xf32, #tpu.memory_space<vmem>>, %arg6: memref<16x128xbf16, #tpu.memory_space<vmem>>) attributes {dimension_semantics = [#tpu.dimension_semantics<parallel>], iteration_bounds = array<i64: 1>, scalar_prefetch = 0 : i64, scratch_operands = 0 : i64, tpu.core_type = #tpu.core_type<tc>, window_params = [{transform_indices = @transform_0, window_bounds = array<i64: 16, 3>}, {pipeline_mode = #tpu.pipeline_mode<synchronous>, transform_indices = @transform_1, window_bounds = array<i64: 3, 128, 256>}, {pipeline_mode = #tpu.pipeline_mode<synchronous>, transform_indices = @transform_2, window_bounds = array<i64: 1, 256>}, {pipeline_mode = #tpu.pipeline_mode<synchronous>, transform_indices = @transform_3, window_bounds = array<i64: 256, 128>}, {pipeline_mode = #tpu.pipeline_mode<synchronous>, transform_indices = @transform_4, window_bounds = array<i64: 1, 128>}, {transform_indices = @transform_5, window_bounds = array<i64: 16, 128>}]} {
    %0 = tpu.iota {dimensions = array<i32: 1>} : vector<16x128xi32>
    %cst = arith.constant 0.000000e+00 : f32
    %1 = vector.broadcast %cst : f32 to vector<16x256xf32>
    %c0 = arith.constant 0 : index
    %c0_0 = arith.constant 0 : index
    %2 = vector.load %arg1[%c0, %c0_0] : memref<16x3xi32, #tpu.memory_space<vmem>>, vector<16x1xi32>
    %3 = vector.broadcast %2 : vector<16x1xi32> to vector<16x128xi32>
    %4 = arith.cmpi eq, %0, %3 : vector<16x128xi32>
    %5 = arith.extui %4 : vector<16x128xi1> to vector<16x128xi32>
    %6 = arith.sitofp %5 : vector<16x128xi32> to vector<16x128xf32>
    %7 = arith.truncf %6 : vector<16x128xf32> to vector<16x128xbf16>
    %c0_1 = arith.constant 0 : index
    %c0_2 = arith.constant 0 : index
    %c0_3 = arith.constant 0 : index
    %8 = vector.load %arg2[%c0_1, %c0_2, %c0_3] : memref<3x128x256xbf16, #tpu.memory_space<vmem>>, vector<1x128x256xbf16>
    %9 = vector.shape_cast %8 : vector<1x128x256xbf16> to vector<128x256xbf16>
    %cst_4 = arith.constant dense<0.000000e+00> : vector<16x256xf32>
    %10 = tpu.matmul %7, %9, %cst_4 {dimension_numbers = #tpu.dot_dimension_numbers<[1], [0], [0], [1], [0, 0, 1, 1], [], []>} : vector<16x128xbf16>, vector<128x256xbf16>, vector<16x256xf32> -> vector<16x256xf32>
    %11 = arith.addf %1, %10 : vector<16x256xf32>
    %c0_5 = arith.constant 0 : index
    %c1 = arith.constant 1 : index
    %12 = vector.load %arg1[%c0_5, %c1] : memref<16x3xi32, #tpu.memory_space<vmem>>, vector<16x1xi32>
    %13 = vector.broadcast %12 : vector<16x1xi32> to vector<16x128xi32>
    %14 = arith.cmpi eq, %0, %13 : vector<16x128xi32>
    %15 = arith.extui %14 : vector<16x128xi1> to vector<16x128xi32>
    %16 = arith.sitofp %15 : vector<16x128xi32> to vector<16x128xf32>
    %17 = arith.truncf %16 : vector<16x128xf32> to vector<16x128xbf16>
    %c1_6 = arith.constant 1 : index
    %c0_7 = arith.constant 0 : index
    %c0_8 = arith.constant 0 : index
    %18 = vector.load %arg2[%c1_6, %c0_7, %c0_8] : memref<3x128x256xbf16, #tpu.memory_space<vmem>>, vector<1x128x256xbf16>
    %19 = vector.shape_cast %18 : vector<1x128x256xbf16> to vector<128x256xbf16>
    %cst_9 = arith.constant dense<0.000000e+00> : vector<16x256xf32>
    %20 = tpu.matmul %17, %19, %cst_9 {dimension_numbers = #tpu.dot_dimension_numbers<[1], [0], [0], [1], [0, 0, 1, 1], [], []>} : vector<16x128xbf16>, vector<128x256xbf16>, vector<16x256xf32> -> vector<16x256xf32>
    %21 = arith.addf %11, %20 : vector<16x256xf32>
    %c0_10 = arith.constant 0 : index
    %c2 = arith.constant 2 : index
    %22 = vector.load %arg1[%c0_10, %c2] : memref<16x3xi32, #tpu.memory_space<vmem>>, vector<16x1xi32>
    %23 = vector.broadcast %22 : vector<16x1xi32> to vector<16x128xi32>
    %24 = arith.cmpi eq, %0, %23 : vector<16x128xi32>
    %25 = arith.extui %24 : vector<16x128xi1> to vector<16x128xi32>
    %26 = arith.sitofp %25 : vector<16x128xi32> to vector<16x128xf32>
    %27 = arith.truncf %26 : vector<16x128xf32> to vector<16x128xbf16>
    %c2_11 = arith.constant 2 : index
    %c0_12 = arith.constant 0 : index
    %c0_13 = arith.constant 0 : index
    %28 = vector.load %arg2[%c2_11, %c0_12, %c0_13] : memref<3x128x256xbf16, #tpu.memory_space<vmem>>, vector<1x128x256xbf16>
    %29 = vector.shape_cast %28 : vector<1x128x256xbf16> to vector<128x256xbf16>
    %cst_14 = arith.constant dense<0.000000e+00> : vector<16x256xf32>
    %30 = tpu.matmul %27, %29, %cst_14 {dimension_numbers = #tpu.dot_dimension_numbers<[1], [0], [0], [1], [0, 0, 1, 1], [], []>} : vector<16x128xbf16>, vector<128x256xbf16>, vector<16x256xf32> -> vector<16x256xf32>
    %31 = arith.addf %21, %30 : vector<16x256xf32>
    %c0_15 = arith.constant 0 : index
    %c0_16 = arith.constant 0 : index
    %32 = vector.load %arg3[%c0_15, %c0_16] : memref<1x256xf32, #tpu.memory_space<vmem>>, vector<1x256xf32>
    %33 = vector.broadcast %32 : vector<1x256xf32> to vector<16x256xf32>
    %34 = arith.addf %31, %33 : vector<16x256xf32>
    %35 = math.tanh %34 : vector<16x256xf32>
    %36 = arith.truncf %35 : vector<16x256xf32> to vector<16x256xbf16>
    %c0_17 = arith.constant 0 : index
    %c0_18 = arith.constant 0 : index
    %37 = vector.load %arg4[%c0_17, %c0_18] : memref<256x128xbf16, #tpu.memory_space<vmem>>, vector<256x128xbf16>
    %cst_19 = arith.constant dense<0.000000e+00> : vector<16x128xf32>
    %38 = tpu.matmul %36, %37, %cst_19 {dimension_numbers = #tpu.dot_dimension_numbers<[1], [0], [0], [1], [0, 0, 1, 1], [], []>} : vector<16x256xbf16>, vector<256x128xbf16>, vector<16x128xf32> -> vector<16x128xf32>
    %c0_20 = arith.constant 0 : index
    %c0_21 = arith.constant 0 : index
    %39 = vector.load %arg5[%c0_20, %c0_21] : memref<1x128xf32, #tpu.memory_space<vmem>>, vector<1x128xf32>
    %40 = vector.broadcast %39 : vector<1x128xf32> to vector<16x128xf32>
    %41 = arith.addf %38, %40 : vector<16x128xf32>
    %42 = arith.truncf %41 : vector<16x128xf32> to vector<16x128xbf16>
    %c0_22 = arith.constant 0 : index
    %c0_23 = arith.constant 0 : index
    %43 = vector.load %arg6[%c0_22, %c0_23] : memref<16x128xbf16, #tpu.memory_space<vmem>>, vector<16x128xbf16>
    tpu.vector_store %arg6[%c0_22, %c0_23], %42 {strides = array<i32>} : memref<16x128xbf16, #tpu.memory_space<vmem>>, vector<16x128xbf16>,
    return
  }
  func.func @transform_0(%arg0: i32) -> (i32, i32) {
    %c0_i32 = arith.constant 0 : i32
    %c0_i32_0 = arith.constant 0 : i32
    return %arg0, %c0_i32 : i32, i32
  }
  func.func @transform_1(%arg0: i32) -> (i32, i32, i32) {
    %c0_i32 = arith.constant 0 : i32
    %c0_i32_0 = arith.constant 0 : i32
    %c0_i32_1 = arith.constant 0 : i32
    %c0_i32_2 = arith.constant 0 : i32
    return %c0_i32, %c0_i32_0, %c0_i32_1 : i32, i32, i32
  }
  func.func @transform_2(%arg0: i32) -> (i32, i32) {
    %c0_i32 = arith.constant 0 : i32
    %c0_i32_0 = arith.constant 0 : i32
    %c0_i32_1 = arith.constant 0 : i32
    return %c0_i32, %c0_i32_0 : i32, i32
  }
  func.func @transform_3(%arg0: i32) -> (i32, i32) {
    %c0_i32 = arith.constant 0 : i32
    %c0_i32_0 = arith.constant 0 : i32
    %c0_i32_1 = arith.constant 0 : i32
    return %c0_i32, %c0_i32_0 : i32, i32
  }
  func.func @transform_4(%arg0: i32) -> (i32, i32) {
    %c0_i32 = arith.constant 0 : i32
    %c0_i32_0 = arith.constant 0 : i32
    %c0_i32_1 = arith.constant 0 : i32
    return %c0_i32, %c0_i32_0 : i32, i32
  }
  func.func @transform_5(%arg0: i32) -> (i32, i32) {
    %c0_i32 = arith.constant 0 : i32
    %c0_i32_0 = arith.constant 0 : i32
    return %arg0, %c0_i32 : i32, i32
  }
}

</mosaic_0001>

<llo_original>
// kernel: mlp_lm_forward.1
$region0: #{mlp_lm_forward.1}
  #allocation0 [shape = 'u32[]', space=smem, size = 0x4, offset = 0x4, fixed_abs, tag = 'smem constant byte address 0x4 - core index']
  #allocation1 [shape = 'u32[144,128]{1,0:T(1,128)}', space=vmem, size = 0x12000, scoped, tag = 'internal scratch']
  %s0 = inlined_call_operand.vmem [shape: s32[16,3], index: 0, kind: input, shape index: {}]
  %s1 = inlined_call_operand.hbm [shape: bf16[3,128,256], index: 1, kind: input, shape index: {}]
  %s2 = inlined_call_operand.vmem [shape: f32[1,256], index: 2, kind: input, shape index: {}]
  %s3 = inlined_call_operand.hbm [shape: bf16[256,128], index: 3, kind: input, shape index: {}]
  %s4 = inlined_call_operand.vmem [shape: f32[1,128], index: 4, kind: input, shape index: {}]
  %s5 = inlined_call_operand.vmem [shape: bf16[16,128], index: 5, kind: output, shape index: {}]
  %s6 = sld [smem:[#allocation0]]
  $region38: #{mlp_lm_forward.1} parent=0
    _
  %s8 = ssub.s32 1, %s6
  %s9 = scalar_select 0, %s8, %s6
  $region1: #{mlp_lm_forward.1} parent=0
    #allocation2 [shape = 'u8[196608]{0}', space=vmem, size = 0x30000, scoped, tag = 'input window, operand 1, single buffered']
    #allocation3 [shape = 's32[1]{0}', space=sflag, size = 0x4, scoped, tag = 'scoped memory for mlp_lm_forward.1']
    #allocation4 [shape = 'u8[65536]{0}', space=vmem, size = 0x10000, scoped, tag = 'input window, operand 3, single buffered']
    #allocation5 [shape = 's32[1]{0}', space=sflag, size = 0x4, scoped, tag = 'scoped memory for mlp_lm_forward.1']
    %10 = vsyncpa [#allocation3], 0
    %11 = vsyncpa [#allocation5], 0
    // Predicated region
    $region2: #{mlp_lm_forward.1} parent=1 // pred_check
      _
    $region3: #{mlp_lm_forward.1} parent=1 // pred_check_branch
      %13 = sbr.rel (0) target = $region5
    $region4: #{mlp_lm_forward.1} parent=1 // pred_region
      _
    $region5: #{mlp_lm_forward.1} parent=1 // pred_fallthru
      _
    // Predicated region
    $region6: #{mlp_lm_forward.1} parent=1 // pred_check
      _
    $region7: #{mlp_lm_forward.1} parent=1 // pred_check_branch
      %15 = sbr.rel (0) target = $region9
    $region8: #{mlp_lm_forward.1} parent=1 // pred_region
      %s17 = ssub.s32 6144, 6144
      %18 = vsyncadd [#allocation3], %s17
      %s19 = sshll.u32 [#allocation2], 4
      %s20 = int_to_ptr.vmem [resolvable:$true] %s19
      %25 = dma.hbm_to_vmem [thread:$0]  %s1, 6144, %s20, [#allocation3], 128, 128, 8
    $region9: #{mlp_lm_forward.1} parent=1 // pred_fallthru
      _
    // Predicated region
    $region10: #{mlp_lm_forward.1} parent=1 // pred_check
      _
    $region11: #{mlp_lm_forward.1} parent=1 // pred_check_branch
      %27 = sbr.rel (0) target = $region13
    $region12: #{mlp_lm_forward.1} parent=1 // pred_region
      _
    $region13: #{mlp_lm_forward.1} parent=1 // pred_fallthru
      _
    // Predicated region
    $region14: #{mlp_lm_forward.1} parent=1 // pred_check
      _
    $region15: #{mlp_lm_forward.1} parent=1 // pred_check_branch
      %29 = sbr.rel (0) target = $region17
    $region16: #{mlp_lm_forward.1} parent=1 // pred_region
      %s31 = ssub.s32 2048, 2048
      %32 = vsyncadd [#allocation5], %s31
      %s33 = sshll.u32 [#allocation4], 4
      %s34 = int_to_ptr.vmem [resolvable:$true] %s33
      %39 = dma.hbm_to_vmem [thread:$0]  %s3, 2048, %s34, [#allocation5], 64, 64, 4
    $region17: #{mlp_lm_forward.1} parent=1 // pred_fallthru
      _
    // Predicated region
    $region18: #{mlp_lm_forward.1} parent=1 // pred_check
      _
    $region19: #{mlp_lm_forward.1} parent=1 // pred_check_branch
      %41 = sbr.rel (0) target = $region21
    $region20: #{mlp_lm_forward.1} parent=1 // pred_region
      _
    $region21: #{mlp_lm_forward.1} parent=1 // pred_fallthru
      _
    // Predicated region
    $region22: #{mlp_lm_forward.1} parent=1 // pred_check
      _
    $region23: #{mlp_lm_forward.1} parent=1 // pred_check_branch
      %43 = sbr.rel (0) target = $region25
    $region24: #{mlp_lm_forward.1} parent=1 // pred_region
      %44 = dma.done [#allocation3], 6144
    $region25: #{mlp_lm_forward.1} parent=1 // pred_fallthru
      _
    // Predicated region
    $region26: #{mlp_lm_forward.1} parent=1 // pred_check
      _
    $region27: #{mlp_lm_forward.1} parent=1 // pred_check_branch
      %46 = sbr.rel (0) target = $region29
    $region28: #{mlp_lm_forward.1} parent=1 // pred_region
      %47 = dma.done [#allocation5], 2048
    $region29: #{mlp_lm_forward.1} parent=1 // pred_fallthru
      _
    %v49 = vlaneseq
    %v50 = vand.u32 %v49, 127
    %v51 = vld [vmem:[%s0] sm:$0xff]
    %v52 = vld [vmem:[%s0 + $0x8] sm:$0xff]
    %53 = vset.pattern.permute.xlu0 0
    %54 = vperm.xlu0 %53, %v51
    %v55 = vpop.permute.xlu0 %54
    %56 = vset.pattern.permute.xlu0 0
    %57 = vperm.xlu0 %56, %v52
    %v58 = vpop.permute.xlu0 %57
    %vm59 = vcmp.eq.s32.totalorder %v50, %v55
    %vm60 = vcmp.eq.s32.totalorder %v50, %v58
    %v61 = vsel %vm59, 1, 0
    %v62 = vsel %vm60, 1, 0
    %v63 = vcvt.s32.f32 %v61
    %v64 = vcvt.s32.f32 %v62
    %v65 = vpack.c.bf16 %v64, %v63
    %v66 = vld [vmem:[#allocation2] sm:$0xff]
    %v67 = vld [vmem:[#allocation2 + $0x8] sm:$0xff]
    %v68 = vld [vmem:[#allocation2 + $0x10] sm:$0xff]
    %v69 = vld [vmem:[#allocation2 + $0x18] sm:$0xff]
    %v70 = vld [vmem:[#allocation2 + $0x20] sm:$0xff]
    %v71 = vld [vmem:[#allocation2 + $0x28] sm:$0xff]
    %v72 = vld [vmem:[#allocation2 + $0x30] sm:$0xff]
    %v73 = vld [vmem:[#allocation2 + $0x38] sm:$0xff]
    %v74 = vld [vmem:[#allocation2 + $0x40] sm:$0xff]
    %v75 = vld [vmem:[#allocation2 + $0x48] sm:$0xff]
    %v76 = vld [vmem:[#allocation2 + $0x50] sm:$0xff]
    %v77 = vld [vmem:[#allocation2 + $0x58] sm:$0xff]
    %v78 = vld [vmem:[#allocation2 + $0x60] sm:$0xff]
    %v79 = vld [vmem:[#allocation2 + $0x68] sm:$0xff]
    %v80 = vld [vmem:[#allocation2 + $0x70] sm:$0xff]
    %v81 = vld [vmem:[#allocation2 + $0x78] sm:$0xff]
    %82 = vset.pattern.permute.xlu0 1
    %83 = vperm.xlu0 %82, %v51
    %v84 = vpop.permute.xlu0 %83
    %85 = vset.pattern.permute.xlu0 1
    %86 = vperm.xlu0 %85, %v52
    %v87 = vpop.permute.xlu0 %86
    %vm88 = vcmp.eq.s32.totalorder %v50, %v84
    %vm89 = vcmp.eq.s32.totalorder %v50, %v87
    %v90 = vsel %vm88, 1, 0
    %v91 = vsel %vm89, 1, 0
    %v92 = vcvt.s32.f32 %v90
    %v93 = vcvt.s32.f32 %v91
    %v94 = vpack.c.bf16 %v93, %v92
    %s95 = scalar_lea.vmem [#allocation2], 128
    %v96 = vld [vmem:[%s95] sm:$0xff]
    %v97 = vld [vmem:[%s95 + $0x8] sm:$0xff]
    %v98 = vld [vmem:[%s95 + $0x10] sm:$0xff]
    %v99 = vld [vmem:[%s95 + $0x18] sm:$0xff]
    %v100 = vld [vmem:[%s95 + $0x20] sm:$0xff]
    %v101 = vld [vmem:[%s95 + $0x28] sm:$0xff]
    %v102 = vld [vmem:[%s95 + $0x30] sm:$0xff]
    %v103 = vld [vmem:[%s95 + $0x38] sm:$0xff]
    %v104 = vld [vmem:[%s95 + $0x40] sm:$0xff]
    %v105 = vld [vmem:[%s95 + $0x48] sm:$0xff]
    %v106 = vld [vmem:[%s95 + $0x50] sm:$0xff]
    %v107 = vld [vmem:[%s95 + $0x58] sm:$0xff]
    %v108 = vld [vmem:[%s95 + $0x60] sm:$0xff]
    %v109 = vld [vmem:[%s95 + $0x68] sm:$0xff]
    %v110 = vld [vmem:[%s95 + $0x70] sm:$0xff]
    %v111 = vld [vmem:[%s95 + $0x78] sm:$0xff]
    %v128 = vunpack.c.l.b16 %v96
    %v129 = vunpack.c.h.b16 %v96
    %v130 = vunpack.c.l.b16 %v97
    %v131 = vunpack.c.h.b16 %v97
    %v132 = vunpack.c.l.b16 %v98
    %v133 = vunpack.c.h.b16 %v98
    %v134 = vunpack.c.l.b16 %v99
    %v135 = vunpack.c.h.b16 %v99
    %v136 = vunpack.c.l.b16 %v100
    %v137 = vunpack.c.h.b16 %v100
    %v138 = vunpack.c.l.b16 %v101
    %v139 = vunpack.c.h.b16 %v101
    %v140 = vunpack.c.l.b16 %v102
    %v141 = vunpack.c.h.b16 %v102
    %v142 = vunpack.c.l.b16 %v103
    %v143 = vunpack.c.h.b16 %v103
    %v144 = vunpack.c.l.b16 %v104
    %v145 = vunpack.c.h.b16 %v104
    %v146 = vunpack.c.l.b16 %v105
    %v147 = vunpack.c.h.b16 %v105
    %v148 = vunpack.c.l.b16 %v106
    %v149 = vunpack.c.h.b16 %v106
    %v150 = vunpack.c.l.b16 %v107
    %v151 = vunpack.c.h.b16 %v107
    %v152 = vunpack.c.l.b16 %v108
    %v153 = vunpack.c.h.b16 %v108
    %v154 = vunpack.c.l.b16 %v109
    %v155 = vunpack.c.h.b16 %v109
    %v156 = vunpack.c.l.b16 %v110
    %v157 = vunpack.c.h.b16 %v110
    %v158 = vunpack.c.l.b16 %v111
    %v159 = vunpack.c.h.b16 %v111
    %v160 = vpack.c.b16 %v130, %v128
    %v161 = vpack.c.b16 %v131, %v129
    %v162 = vpack.c.b16 %v134, %v132
    %v163 = vpack.c.b16 %v135, %v133
    %v164 = vpack.c.b16 %v138, %v136
    %v165 = vpack.c.b16 %v139, %v137
    %v166 = vpack.c.b16 %v142, %v140
    %v167 = vpack.c.b16 %v143, %v141
    %v168 = vpack.c.b16 %v146, %v144
    %v169 = vpack.c.b16 %v147, %v145
    %v170 = vpack.c.b16 %v150, %v148
    %v171 = vpack.c.b16 %v151, %v149
    %v172 = vpack.c.b16 %v154, %v152
    %v173 = vpack.c.b16 %v155, %v153
    %v174 = vpack.c.b16 %v158, %v156
    %v175 = vpack.c.b16 %v159, %v157
    %192 = vmatprep.subr.bf16.mxu0 %v161
    %193 = vmatpush1.bf16.msra.mxu0 %v160
    %194 = vmatprep.subr.bf16.mxu0 %v163
    %195 = vmatpush1.bf16.msra.mxu0 %v162
    %196 = vmatprep.subr.bf16.mxu0 %v165
    %197 = vmatpush1.bf16.msra.mxu0 %v164
    %198 = vmatprep.subr.bf16.mxu0 %v167
    %199 = vmatpush1.bf16.msra.mxu0 %v166
    %200 = vmatprep.subr.bf16.mxu0 %v169
    %201 = vmatpush1.bf16.msra.mxu0 %v168
    %202 = vmatprep.subr.bf16.mxu0 %v171
    %203 = vmatpush1.bf16.msra.mxu0 %v170
    %204 = vmatprep.subr.bf16.mxu0 %v173
    %205 = vmatpush1.bf16.msra.mxu0 %v172
    %206 = vmatprep.subr.bf16.mxu0 %v175
    %207 = vmatpush1.bf16.msra.mxu0 %v174
    %208 = vmatprep.subr.bf16.mxu0 0
    %209 = vmatpush1.bf16.msra.mxu0 0
    %210 = vmatprep.subr.bf16.mxu0 0
    %211 = vmatpush1.bf16.msra.mxu0 0
    %212 = vmatprep.subr.bf16.mxu0 0
    %213 = vmatpush1.bf16.msra.mxu0 0
    %214 = vmatprep.subr.bf16.mxu0 0
    %215 = vmatpush1.bf16.msra.mxu0 0
    %216 = vmatprep.subr.bf16.mxu0 0
    %217 = vmatpush1.bf16.msra.mxu0 0
    %218 = vmatprep.subr.bf16.mxu0 0
    %219 = vmatpush1.bf16.msra.mxu0 0
    %220 = vmatprep.subr.bf16.mxu0 0
    %221 = vmatpush1.bf16.msra.mxu0 0
    %222 = vmatprep.subr.bf16.mxu0 0
    %223 = vmatpush1.bf16.msra.mxu0 0
    %224 = vmatprep.mubr.bf16.mxu0 0
    %225 = vmatmul.mubr.bf16.gmra.mrb[0].mxu0 %v94
    %v226 = vpop.f32.mrb[0].mxu0
    %v227 = vadd.f32 0.0, %v226
    %v228 = vpop.f32.mrb[0].mxu0
    %v229 = vadd.f32 0.0, %v228
    %v230 = vpop.f32.mrb[0].mxu0
    %v231 = vadd.f32 0.0, %v230
    %v232 = vpop.f32.mrb[0].mxu0
    %v233 = vadd.f32 0.0, %v232
    %234 = vdwg.mxu0
    %v251 = vunpack.c.l.b16 %v66
    %v252 = vunpack.c.h.b16 %v66
    %v253 = vunpack.c.l.b16 %v67
    %v254 = vunpack.c.h.b16 %v67
    %v255 = vunpack.c.l.b16 %v68
    %v256 = vunpack.c.h.b16 %v68
    %v257 = vunpack.c.l.b16 %v69
    %v258 = vunpack.c.h.b16 %v69
    %v259 = vunpack.c.l.b16 %v70
    %v260 = vunpack.c.h.b16 %v70
    %v261 = vunpack.c.l.b16 %v71
    %v262 = vunpack.c.h.b16 %v71
    %v263 = vunpack.c.l.b16 %v72
    %v264 = vunpack.c.h.b16 %v72
    %v265 = vunpack.c.l.b16 %v73
    %v266 = vunpack.c.h.b16 %v73
    %v267 = vunpack.c.l.b16 %v74
    %v268 = vunpack.c.h.b16 %v74
    %v269 = vunpack.c.l.b16 %v75
    %v270 = vunpack.c.h.b16 %v75
    %v271 = vunpack.c.l.b16 %v76
    %v272 = vunpack.c.h.b16 %v76
    %v273 = vunpack.c.l.b16 %v77
    %v274 = vunpack.c.h.b16 %v77
    %v275 = vunpack.c.l.b16 %v78
    %v276 = vunpack.c.h.b16 %v78
    %v277 = vunpack.c.l.b16 %v79
    %v278 = vunpack.c.h.b16 %v79
    %v279 = vunpack.c.l.b16 %v80
    %v280 = vunpack.c.h.b16 %v80
    %v281 = vunpack.c.l.b16 %v81
    %v282 = vunpack.c.h.b16 %v81
    %v283 = vpack.c.b16 %v253, %v251
    %v284 = vpack.c.b16 %v254, %v252
    %v285 = vpack.c.b16 %v257, %v255
    %v286 = vpack.c.b16 %v258, %v256
    %v287 = vpack.c.b16 %v261, %v259
    %v288 = vpack.c.b16 %v262, %v260
    %v289 = vpack.c.b16 %v265, %v263
    %v290 = vpack.c.b16 %v266, %v264
    %v291 = vpack.c.b16 %v269, %v267
    %v292 = vpack.c.b16 %v270, %v268
    %v293 = vpack.c.b16 %v273, %v271
    %v294 = vpack.c.b16 %v274, %v272
    %v295 = vpack.c.b16 %v277, %v275
    %v296 = vpack.c.b16 %v278, %v276
    %v297 = vpack.c.b16 %v281, %v279
    %v298 = vpack.c.b16 %v282, %v280
    %315 = vmatprep.subr.bf16.mxu0 %v284
    %316 = vmatpush1.bf16.msra.mxu0 %v283
    %317 = vmatprep.subr.bf16.mxu0 %v286
    %318 = vmatpush1.bf16.msra.mxu0 %v285
    %319 = vmatprep.subr.bf16.mxu0 %v288
    %320 = vmatpush1.bf16.msra.mxu0 %v287
    %321 = vmatprep.subr.bf16.mxu0 %v290
    %322 = vmatpush1.bf16.msra.mxu0 %v289
    %323 = vmatprep.subr.bf16.mxu0 %v292
    %324 = vmatpush1.bf16.msra.mxu0 %v291
    %325 = vmatprep.subr.bf16.mxu0 %v294
    %326 = vmatpush1.bf16.msra.mxu0 %v293
    %327 = vmatprep.subr.bf16.mxu0 %v296
    %328 = vmatpush1.bf16.msra.mxu0 %v295
    %329 = vmatprep.subr.bf16.mxu0 %v298
    %330 = vmatpush1.bf16.msra.mxu0 %v297
    %331 = vmatprep.subr.bf16.mxu0 0
    %332 = vmatpush1.bf16.msra.mxu0 0
    %333 = vmatprep.subr.bf16.mxu0 0
    %334 = vmatpush1.bf16.msra.mxu0 0
    %335 = vmatprep.subr.bf16.mxu0 0
    %336 = vmatpush1.bf16.msra.mxu0 0
    %337 = vmatprep.subr.bf16.mxu0 0
    %338 = vmatpush1.bf16.msra.mxu0 0
    %339 = vmatprep.subr.bf16.mxu0 0
    %340 = vmatpush1.bf16.msra.mxu0 0
    %341 = vmatprep.subr.bf16.mxu0 0
    %342 = vmatpush1.bf16.msra.mxu0 0
    %343 = vmatprep.subr.bf16.mxu0 0
    %344 = vmatpush1.bf16.msra.mxu0 0
    %345 = vmatprep.subr.bf16.mxu0 0
    %346 = vmatpush1.bf16.msra.mxu0 0
    %347 = vmatprep.mubr.bf16.mxu0 0
    %348 = vmatmul.mubr.bf16.gmra.mrb[0].mxu0 %v65
    %v349 = vpop.f32.mrb[0].mxu0
    %v350 = vadd.f32 %v227, %v349
    %v351 = vpop.f32.mrb[0].mxu0
    %v352 = vadd.f32 %v229, %v351
    %v353 = vpop.f32.mrb[0].mxu0
    %v354 = vadd.f32 %v231, %v353
    %v355 = vpop.f32.mrb[0].mxu0
    %v356 = vadd.f32 %v233, %v355
    %357 = vdwg.mxu0
    %358 = vset.pattern.permute.xlu0 2
    %359 = vperm.xlu0 %358, %v51
    %v360 = vpop.permute.xlu0 %359
    %361 = vset.pattern.permute.xlu0 2
    %362 = vperm.xlu0 %361, %v52
    %v363 = vpop.permute.xlu0 %362
    %vm364 = vcmp.eq.s32.totalorder %v50, %v360
    %vm365 = vcmp.eq.s32.totalorder %v50, %v363
    %v366 = vsel %vm364, 1, 0
    %v367 = vsel %vm365, 1, 0
    %v368 = vcvt.s32.f32 %v366
    %v369 = vcvt.s32.f32 %v367
    %v370 = vpack.c.bf16 %v369, %v368
    %s371 = scalar_lea.vmem [#allocation2], 256
    %v372 = vld [vmem:[%s371] sm:$0xff]
    %v373 = vld [vmem:[%s371 + $0x8] sm:$0xff]
    %v374 = vld [vmem:[%s371 + $0x10] sm:$0xff]
    %v375 = vld [vmem:[%s371 + $0x18] sm:$0xff]
    %v376 = vld [vmem:[%s371 + $0x20] sm:$0xff]
    %v377 = vld [vmem:[%s371 + $0x28] sm:$0xff]
    %v378 = vld [vmem:[%s371 + $0x30] sm:$0xff]
    %v379 = vld [vmem:[%s371 + $0x38] sm:$0xff]
    %v380 = vld [vmem:[%s371 + $0x40] sm:$0xff]
    %v381 = vld [vmem:[%s371 + $0x48] sm:$0xff]
    %v382 = vld [vmem:[%s371 + $0x50] sm:$0xff]
    %v383 = vld [vmem:[%s371 + $0x58] sm:$0xff]
    %v384 = vld [vmem:[%s371 + $0x60] sm:$0xff]
    %v385 = vld [vmem:[%s371 + $0x68] sm:$0xff]
    %v386 = vld [vmem:[%s371 + $0x70] sm:$0xff]
    %v387 = vld [vmem:[%s371 + $0x78] sm:$0xff]
    %v404 = vunpack.c.l.b16 %v372
    %v405 = vunpack.c.h.b16 %v372
    %v406 = vunpack.c.l.b16 %v373
    %v407 = vunpack.c.h.b16 %v373
    %v408 = vunpack.c.l.b16 %v374
    %v409 = vunpack.c.h.b16 %v374
    %v410 = vunpack.c.l.b16 %v375
    %v411 = vunpack.c.h.b16 %v375
    %v412 = vunpack.c.l.b16 %v376
    %v413 = vunpack.c.h.b16 %v376
    %v414 = vunpack.c.l.b16 %v377
    %v415 = vunpack.c.h.b16 %v377
    %v416 = vunpack.c.l.b16 %v378
    %v417 = vunpack.c.h.b16 %v378
    %v418 = vunpack.c.l.b16 %v379
    %v419 = vunpack.c.h.b16 %v379
    %v420 = vunpack.c.l.b16 %v380
    %v421 = vunpack.c.h.b16 %v380
    %v422 = vunpack.c.l.b16 %v381
    %v423 = vunpack.c.h.b16 %v381
    %v424 = vunpack.c.l.b16 %v382
    %v425 = vunpack.c.h.b16 %v382
    %v426 = vunpack.c.l.b16 %v383
    %v427 = vunpack.c.h.b16 %v383
    %v428 = vunpack.c.l.b16 %v384
    %v429 = vunpack.c.h.b16 %v384
    %v430 = vunpack.c.l.b16 %v385
    %v431 = vunpack.c.h.b16 %v385
    %v432 = vunpack.c.l.b16 %v386
    %v433 = vunpack.c.h.b16 %v386
    %v434 = vunpack.c.l.b16 %v387
    %v435 = vunpack.c.h.b16 %v387
    %v436 = vpack.c.b16 %v406, %v404
    %v437 = vpack.c.b16 %v407, %v405
    %v438 = vpack.c.b16 %v410, %v408
    %v439 = vpack.c.b16 %v411, %v409
    %v440 = vpack.c.b16 %v414, %v412
    %v441 = vpack.c.b16 %v415, %v413
    %v442 = vpack.c.b16 %v418, %v416
    %v443 = vpack.c.b16 %v419, %v417
    %v444 = vpack.c.b16 %v422, %v420
    %v445 = vpack.c.b16 %v423, %v421
    %v446 = vpack.c.b16 %v426, %v424
    %v447 = vpack.c.b16 %v427, %v425
    %v448 = vpack.c.b16 %v430, %v428
    %v449 = vpack.c.b16 %v431, %v429
    %v450 = vpack.c.b16 %v434, %v432
    %v451 = vpack.c.b16 %v435, %v433
    %468 = vmatprep.subr.bf16.mxu0 %v437
    %469 = vmatpush1.bf16.msra.mxu0 %v436
    %470 = vmatprep.subr.bf16.mxu0 %v439
    %471 = vmatpush1.bf16.msra.mxu0 %v438
    %472 = vmatprep.subr.bf16.mxu0 %v441
    %473 = vmatpush1.bf16.msra.mxu0 %v440
    %474 = vmatprep.subr.bf16.mxu0 %v443
    %475 = vmatpush1.bf16.msra.mxu0 %v442
    %476 = vmatprep.subr.bf16.mxu0 %v445
    %477 = vmatpush1.bf16.msra.mxu0 %v444
    %478 = vmatprep.subr.bf16.mxu0 %v447
    %479 = vmatpush1.bf16.msra.mxu0 %v446
    %480 = vmatprep.subr.bf16.mxu0 %v449
    %481 = vmatpush1.bf16.msra.mxu0 %v448
    %482 = vmatprep.subr.bf16.mxu0 %v451
    %483 = vmatpush1.bf16.msra.mxu0 %v450
    %484 = vmatprep.subr.bf16.mxu0 0
    %485 = vmatpush1.bf16.msra.mxu0 0
    %486 = vmatprep.subr.bf16.mxu0 0
    %487 = vmatpush1.bf16.msra.mxu0 0
    %488 = vmatprep.subr.bf16.mxu0 0
    %489 = vmatpush1.bf16.msra.mxu0 0
    %490 = vmatprep.subr.bf16.mxu0 0
    %491 = vmatpush1.bf16.msra.mxu0 0
    %492 = vmatprep.subr.bf16.mxu0 0
    %493 = vmatpush1.bf16.msra.mxu0 0
    %494 = vmatprep.subr.bf16.mxu0 0
    %495 = vmatpush1.bf16.msra.mxu0 0
    %496 = vmatprep.subr.bf16.mxu0 0
    %497 = vmatpush1.bf16.msra.mxu0 0
    %498 = vmatprep.subr.bf16.mxu0 0
    %499 = vmatpush1.bf16.msra.mxu0 0
    %500 = vmatprep.mubr.bf16.mxu0 0
    %501 = vmatmul.mubr.bf16.gmra.mrb[0].mxu0 %v370
    %v502 = vpop.f32.mrb[0].mxu0
    %v503 = vadd.f32 0.0, %v502
    %v504 = vpop.f32.mrb[0].mxu0
    %v505 = vadd.f32 0.0, %v504
    %v506 = vpop.f32.mrb[0].mxu0
    %v507 = vadd.f32 0.0, %v506
    %v508 = vpop.f32.mrb[0].mxu0
    %v509 = vadd.f32 0.0, %v508
    %510 = vdwg.mxu0
    %v511 = vadd.f32 %v350, %v503
    %v512 = vadd.f32 %v352, %v505
    %v513 = vadd.f32 %v354, %v507
    %v514 = vadd.f32 %v356, %v509
    %v515 = vld [vmem:[%s2] sm:$0x3]
    %v517 = vlaneseq
    %v518 = vshrl.u32 %v517, 7
    %v519 = vsub.s32 0, %v518
    %v520 = vrot.slane %v515, %v519
    %v521 = vlaneseq
    %v522 = vshrl.u32 %v521, 7
    %v523 = vsub.s32 1, %v522
    %v524 = vrot.slane %v515, %v523
    %v527 = vadd.f32 %v511, %v520
    %v528 = vadd.f32 %v512, %v524
    %v529 = vadd.f32 %v513, %v520
    %v530 = vadd.f32 %v514, %v524
    %v531 = vtanh.pop %v527
    %v532 = vtanh.pop %v528
    %v533 = vtanh.pop %v529
    %v534 = vtanh.pop %v530
    %v535 = vpack.c.bf16 %v533, %v531
    %v536 = vpack.c.bf16 %v534, %v532
    %v537 = vld [vmem:[#allocation4] sm:$0xf]
    %v538 = vld [vmem:[#allocation4 + $0x4] sm:$0xf]
    %v539 = vld [vmem:[#allocation4 + $0x8] sm:$0xf]
    %v540 = vld [vmem:[#allocation4 + $0xc] sm:$0xf]
    %v541 = vld [vmem:[#allocation4 + $0x10] sm:$0xf]
    %v542 = vld [vmem:[#allocation4 + $0x14] sm:$0xf]
    %v543 = vld [vmem:[#allocation4 + $0x18] sm:$0xf]
    %v544 = vld [vmem:[#allocation4 + $0x1c] sm:$0xf]
    %v545 = vld [vmem:[#allocation4 + $0x20] sm:$0xf]
    %v546 = vld [vmem:[#allocation4 + $0x24] sm:$0xf]
    %v547 = vld [vmem:[#allocation4 + $0x28] sm:$0xf]
    %v548 = vld [vmem:[#allocation4 + $0x2c] sm:$0xf]
    %v549 = vld [vmem:[#allocation4 + $0x30] sm:$0xf]
    %v550 = vld [vmem:[#allocation4 + $0x34] sm:$0xf]
    %v551 = vld [vmem:[#allocation4 + $0x38] sm:$0xf]
    %v552 = vld [vmem:[#allocation4 + $0x3c] sm:$0xf]
    %v553 = vld [vmem:[#allocation4 + $0x40] sm:$0xf]
    %v554 = vld [vmem:[#allocation4 + $0x44] sm:$0xf]
    %v555 = vld [vmem:[#allocation4 + $0x48] sm:$0xf]
    %v556 = vld [vmem:[#allocation4 + $0x4c] sm:$0xf]
    %v557 = vld [vmem:[#allocation4 + $0x50] sm:$0xf]
    %v558 = vld [vmem:[#allocation4 + $0x54] sm:$0xf]
    %v559 = vld [vmem:[#allocation4 + $0x58] sm:$0xf]
    %v560 = vld [vmem:[#allocation4 + $0x5c] sm:$0xf]
    %v561 = vld [vmem:[#allocation4 + $0x60] sm:$0xf]
    %v562 = vld [vmem:[#allocation4 + $0x64] sm:$0xf]
    %v563 = vld [vmem:[#allocation4 + $0x68] sm:$0xf]
    %v564 = vld [vmem:[#allocation4 + $0x6c] sm:$0xf]
    %v565 = vld [vmem:[#allocation4 + $0x70] sm:$0xf]
    %v566 = vld [vmem:[#allocation4 + $0x74] sm:$0xf]
    %v567 = vld [vmem:[#allocation4 + $0x78] sm:$0xf]
    %v568 = vld [vmem:[#allocation4 + $0x7c] sm:$0xf]
    %v569 = vld [vmem:[%s4] sm:$0x1]
    %v571 = vlaneseq
    %v572 = vshrl.u32 %v571, 7
    %v573 = vsub.s32 0, %v572
    %v574 = vrot.slane %v569, %v573
    %v608 = vunpack.c.l.b16 %v537
    %v609 = vunpack.c.l.b16 %v538
    %v610 = vunpack.c.l.b16 %v539
    %v611 = vunpack.c.l.b16 %v540
    %v612 = vunpack.c.l.b16 %v541
    %v613 = vunpack.c.l.b16 %v542
    %v614 = vunpack.c.l.b16 %v543
    %v615 = vunpack.c.l.b16 %v544
    %v616 = vunpack.c.l.b16 %v545
    %v617 = vunpack.c.l.b16 %v546
    %v618 = vunpack.c.l.b16 %v547
    %v619 = vunpack.c.l.b16 %v548
    %v620 = vunpack.c.l.b16 %v549
    %v621 = vunpack.c.l.b16 %v550
    %v622 = vunpack.c.l.b16 %v551
    %v623 = vunpack.c.l.b16 %v552
    %v624 = vunpack.c.l.b16 %v553
    %v625 = vunpack.c.l.b16 %v554
    %v626 = vunpack.c.l.b16 %v555
    %v627 = vunpack.c.l.b16 %v556
    %v628 = vunpack.c.l.b16 %v557
    %v629 = vunpack.c.l.b16 %v558
    %v630 = vunpack.c.l.b16 %v559
    %v631 = vunpack.c.l.b16 %v560
    %v632 = vunpack.c.l.b16 %v561
    %v633 = vunpack.c.l.b16 %v562
    %v634 = vunpack.c.l.b16 %v563
    %v635 = vunpack.c.l.b16 %v564
    %v636 = vunpack.c.l.b16 %v565
    %v637 = vunpack.c.l.b16 %v566
    %v638 = vunpack.c.l.b16 %v567
    %v639 = vunpack.c.l.b16 %v568
    %v640 = vpack.c.b16 %v609, %v608
    %v641 = vpack.c.b16 %v611, %v610
    %v642 = vpack.c.b16 %v613, %v612
    %v643 = vpack.c.b16 %v615, %v614
    %v644 = vpack.c.b16 %v617, %v616
    %v645 = vpack.c.b16 %v619, %v618
    %v646 = vpack.c.b16 %v621, %v620
    %v647 = vpack.c.b16 %v623, %v622
    %v648 = vpack.c.b16 %v625, %v624
    %v649 = vpack.c.b16 %v627, %v626
    %v650 = vpack.c.b16 %v629, %v628
    %v651 = vpack.c.b16 %v631, %v630
    %v652 = vpack.c.b16 %v633, %v632
    %v653 = vpack.c.b16 %v635, %v634
    %v654 = vpack.c.b16 %v637, %v636
    %v655 = vpack.c.b16 %v639, %v638
    %672 = vmatprep.subr.bf16.mxu0 0
    %673 = vmatpush1.bf16.msra.mxu0 %v640
    %674 = vmatprep.subr.bf16.mxu0 0
    %675 = vmatpush1.bf16.msra.mxu0 %v641
    %676 = vmatprep.subr.bf16.mxu0 0
    %677 = vmatpush1.bf16.msra.mxu0 %v642
    %678 = vmatprep.subr.bf16.mxu0 0
    %679 = vmatpush1.bf16.msra.mxu0 %v643
    %680 = vmatprep.subr.bf16.mxu0 0
    %681 = vmatpush1.bf16.msra.mxu0 %v644
    %682 = vmatprep.subr.bf16.mxu0 0
    %683 = vmatpush1.bf16.msra.mxu0 %v645
    %684 = vmatprep.subr.bf16.mxu0 0
    %685 = vmatpush1.bf16.msra.mxu0 %v646
    %686 = vmatprep.subr.bf16.mxu0 0
    %687 = vmatpush1.bf16.msra.mxu0 %v647
    %688 = vmatprep.subr.bf16.mxu0 0
    %689 = vmatpush1.bf16.msra.mxu0 %v648
    %690 = vmatprep.subr.bf16.mxu0 0
    %691 = vmatpush1.bf16.msra.mxu0 %v649
    %692 = vmatprep.subr.bf16.mxu0 0
    %693 = vmatpush1.bf16.msra.mxu0 %v650
    %694 = vmatprep.subr.bf16.mxu0 0
    %695 = vmatpush1.bf16.msra.mxu0 %v651
    %696 = vmatprep.subr.bf16.mxu0 0
    %697 = vmatpush1.bf16.msra.mxu0 %v652
    %698 = vmatprep.subr.bf16.mxu0 0
    %699 = vmatpush1.bf16.msra.mxu0 %v653
    %700 = vmatprep.subr.bf16.mxu0 0
    %701 = vmatpush1.bf16.msra.mxu0 %v654
    %702 = vmatprep.subr.bf16.mxu0 0
    %703 = vmatpush1.bf16.msra.mxu0 %v655
    %704 = vmatprep.mubr.bf16.mxu0 %v536
    %705 = vmatmul.mubr.bf16.gmra.mrb[0].mxu0 %v535
    %v706 = vpop.f32.mrb[0].mxu0
    %v707 = vadd.f32 %v574, %v706
    %v708 = vpop.f32.mrb[0].mxu0
    %v709 = vpop.f32.mrb[0].mxu0
    %v710 = vadd.f32 %v574, %v709
    %v711 = vpop.f32.mrb[0].mxu0
    %712 = vdwg.mxu0
    %v713 = vpack.c.bf16 %v710, %v707
    %v715 = vunpack.c.l.b16 %v713
    %v716 = vunpack.c.h.b16 %v713
    %v717 = vpack.c.b16 %v715, %v715
    %v718 = vpack.c.b16 %v716, %v716
    %721 = vst [vmem:[%s5] sm:$0xf] %v717
    %722 = vst [vmem:[%s5 + $0x4] sm:$0xf] %v718
    // Predicated region
    $region30: #{mlp_lm_forward.1} parent=1 // pred_check
      _
    $region31: #{mlp_lm_forward.1} parent=1 // pred_check_branch
      %724 = sbr.rel (0) target = $region33
    $region32: #{mlp_lm_forward.1} parent=1 // pred_region
      _
    $region33: #{mlp_lm_forward.1} parent=1 // pred_fallthru
      _
    // Predicated region
    $region34: #{mlp_lm_forward.1} parent=1 // pred_check
      _
    $region35: #{mlp_lm_forward.1} parent=1 // pred_check_branch
      %726 = sbr.rel (0) target = $region37
    $region36: #{mlp_lm_forward.1} parent=1 // pred_region
      _
    $region37: #{mlp_lm_forward.1} parent=1 // pred_fallthru
      _
    %727 = vsyncpa [#allocation3], 1
    %728 = vsyncpa [#allocation5], 1

</llo_original>
